<compile_context>
chip_gen: v7x
topology: tpu7x:2x2x1
jax: 0.10.0
libtpu: 0.0.40
codegen_flags: <defaults>
</compile_context>

<pallas_src>
import functools

import jax
import jax.numpy as jnp
from jax.experimental import pallas as pl
from jax.experimental.pallas import tpu as pltpu


_GRID = 2                      # grid steps; lets both v7x TensorCores issue DMAs
_CHUNKS = 4                    # outstanding DMAs per grid step
_ROW_QUANT = 8                 # keep chunk boundaries on 8-row (sublane-tile) boundaries
_MIN_KERNEL_BYTES = 1 << 20    # below this, kernel launch overhead dominates -> bypass


def _whole_copy_kernel(x_hbm, o_hbm, sem):
    """Fallback: single HBM->HBM DMA of the entire (arbitrary-shaped) array."""
    cp = pltpu.make_async_copy(x_hbm, o_hbm, sem.at[0])
    cp.start()
    cp.wait()


def _chunked_copy_kernel(x_hbm, o_hbm, sems, *, rows_per_step, chunk_rows,
                         tail_start, tail_rows, grid, chunks):
    """Chunked HBM->HBM copy of a 2-D (rows, cols) slab.

    Each grid step copies `rows_per_step` rows as `chunks` outstanding DMAs.
    A small static tail (ragged rows, < grid*chunks*8 + 8 rows) is copied by
    one extra DMA issued on the last grid step only.  All chunk sizes are
    static; only the row offsets depend on program_id.
    """
    pid = pl.program_id(0)
    row0 = pid * rows_per_step

    tail_cp = None
    if tail_rows > 0:
        tail_cp = pltpu.make_async_copy(
            x_hbm.at[pl.ds(tail_start, tail_rows), :],
            o_hbm.at[pl.ds(tail_start, tail_rows), :],
            sems.at[pid, chunks],
        )

        @pl.when(pid == grid - 1)
        def _start_tail():
            tail_cp.start()

    copies = []
    for j in range(chunks):
        start = row0 + j * chunk_rows
        cp = pltpu.make_async_copy(
            x_hbm.at[pl.ds(start, chunk_rows), :],
            o_hbm.at[pl.ds(start, chunk_rows), :],
            sems.at[pid, j],
        )
        cp.start()
        copies.append(cp)

    for cp in copies:
        cp.wait()

    if tail_rows > 0:
        @pl.when(pid == grid - 1)
        def _wait_tail():
            tail_cp.wait()


def _chunked_copy(x2d: jax.Array) -> jax.Array:
    rows, cols = x2d.shape
    itemsize = jnp.dtype(x2d.dtype).itemsize

    groups = rows // _ROW_QUANT                       # full 8-row groups
    groups_per_chunk = groups // (_GRID * _CHUNKS)    # >= 1 (checked by caller)
    chunk_rows = groups_per_chunk * _ROW_QUANT
    rows_per_step = _CHUNKS * chunk_rows
    tail_start = _GRID * rows_per_step
    tail_rows = rows - tail_start                     # 0 <= tail_rows < GRID*CHUNKS*8 + 8

    kernel = functools.partial(
        _chunked_copy_kernel,
        rows_per_step=rows_per_step,
        chunk_rows=chunk_rows,
        tail_start=tail_start,
        tail_rows=tail_rows,
        grid=_GRID,
        chunks=_CHUNKS,
    )

    return pl.pallas_call(
        kernel,
        out_shape=jax.ShapeDtypeStruct((rows, cols), x2d.dtype),
        grid=(_GRID,),
        in_specs=[pl.BlockSpec(memory_space=pl.ANY)],
        out_specs=pl.BlockSpec(memory_space=pl.ANY),
        scratch_shapes=[pltpu.SemaphoreType.DMA((_GRID, _CHUNKS + 1))],
        compiler_params=pltpu.CompilerParams(
            dimension_semantics=("parallel",),
        ),
        cost_estimate=pl.CostEstimate(
            flops=0,
            transcendentals=0,
            bytes_accessed=2 * rows * cols * itemsize,
        ),
    )(x2d)


def _whole_copy(x: jax.Array) -> jax.Array:
    itemsize = jnp.dtype(x.dtype).itemsize
    return pl.pallas_call(
        _whole_copy_kernel,
        out_shape=jax.ShapeDtypeStruct(x.shape, x.dtype),
        in_specs=[pl.BlockSpec(memory_space=pl.ANY)],
        out_specs=pl.BlockSpec(memory_space=pl.ANY),
        scratch_shapes=[pltpu.SemaphoreType.DMA((1,))],
        cost_estimate=pl.CostEstimate(
            flops=0,
            transcendentals=0,
            bytes_accessed=2 * int(x.size) * itemsize,
        ),
    )(x)


def sim_identical_mapping(feature: jax.Array, *, use_kernel: bool = True,
                          min_kernel_bytes: int = _MIN_KERNEL_BYTES) -> jax.Array:
    """Identity mapping (SimIdenticalMapping.forward).

    Returns `feature` directly (the true optimum: zero HBM traffic) when
    use_kernel=False, for empty tensors, or for tensors smaller than
    `min_kernel_bytes`.  Otherwise a materialized copy is produced by a
    roofline HBM->HBM DMA Pallas kernel.
    """
    if not use_kernel or feature.size == 0:
        return feature

    itemsize = jnp.dtype(feature.dtype).itemsize
    nbytes = int(feature.size) * itemsize
    if nbytes < min_kernel_bytes:
        # Kernel launch / prologue overhead dominates tiny copies; for an
        # identity, returning the input is semantically equivalent in JAX.
        return feature

    if feature.ndim >= 2:
        # Collapse leading dims only (minor dim untouched) -> free bitcast, no
        # layout copy.  Chunk the resulting (rows, cols) slab along rows.
        x2d = feature.reshape(-1, feature.shape[-1])
        if (x2d.shape[0] // _ROW_QUANT) >= _GRID * _CHUNKS:
            return _chunked_copy(x2d).reshape(feature.shape)

    # Awkward / small-row shapes: one whole-array DMA, no reshape needed.
    return _whole_copy(feature)


if __name__ == "__main__":
    key = jax.random.PRNGKey(0)
    k1, k2, k3 = jax.random.split(key, 3)

    # Small NCHW-style feature map, consistent with the module's typical use.
    x = jax.random.normal(k1, (2, 4, 16, 16), dtype=jnp.float32)

    # Default path: identity is free (small tensor -> bypass the kernel).
    y = sim_identical_mapping(x)
    jax.block_until_ready(y)
    assert y.shape == x.shape and y.dtype == x.dtype
    assert bool(jnp.all(y == x))

    # Force the chunked HBM->HBM DMA kernel (128-row x 16-col slab, no tail).
    y1 = sim_identical_mapping(x, min_kernel_bytes=0)
    jax.block_until_ready(y1)
    assert y1.shape == x.shape and y1.dtype == x.dtype
    assert bool(jnp.all(y1 == x))

    # Ragged row count -> exercises the static tail DMA.
    x2 = jax.random.normal(k2, (2, 4, 17, 16), dtype=jnp.float32)
    y2 = sim_identical_mapping(x2, min_kernel_bytes=0)
    jax.block_until_ready(y2)
    assert y2.shape == x2.shape and bool(jnp.all(y2 == x2))

    # Awkward small shape -> whole-array single-DMA fallback.
    x3 = jax.random.normal(k3, (3, 5, 7), dtype=jnp.float32)
    y3 = sim_identical_mapping(x3, min_kernel_bytes=0)
    jax.block_until_ready(y3)
    assert y3.shape == x3.shape and bool(jnp.all(y3 == x3))

    print("KERNEL_OK")
</pallas_src>

<mosaic_0001>
module attributes {stable_mosaic.version = 11 : i64} {
  func.func @_chunked_copy_kernel(%arg0: i32, %arg1: memref<128x16xf32, #tpu.memory_space<any>>, %arg2: memref<128x16xf32, #tpu.memory_space<any>>, %arg3: memref<2x5x!tpu.dma_semaphore, #tpu.memory_space<semaphore_mem>>) attributes {dimension_semantics = [#tpu.dimension_semantics<parallel>], iteration_bounds = array<i64: 2>, scalar_prefetch = 0 : i64, scratch_operands = 1 : i64, tpu.core_type = #tpu.core_type<tc>, window_params = [{}, {}]} {
    %c64_i32 = arith.constant 64 : i32
    %0 = arith.muli %arg0, %c64_i32 : i32
    %c0_i32 = arith.constant 0 : i32
    %1 = arith.addi %0, %c0_i32 : i32
    %c0_i32_0 = arith.constant 0 : i32
    %c0_i32_1 = arith.constant 0 : i32
    %2 = tpu.memref_slice %arg1[%1, %c0_i32_1] : memref<128x16xf32, #tpu.memory_space<any>> -> memref<16x16xf32, #tpu.memory_space<any>>
    %c0_i32_2 = arith.constant 0 : i32
    %3 = tpu.memref_slice %arg2[%1, %c0_i32_2] : memref<128x16xf32, #tpu.memory_space<any>> -> memref<16x16xf32, #tpu.memory_space<any>>
    %4 = tpu.memref_slice %arg3[%arg0, %c0_i32_0] : memref<2x5x!tpu.dma_semaphore, #tpu.memory_space<semaphore_mem>> -> memref<1x1x!tpu.dma_semaphore, #tpu.memory_space<semaphore_mem>>
    %5 = tpu.memref_squeeze %4 : memref<1x1x!tpu.dma_semaphore, #tpu.memory_space<semaphore_mem>> -> memref<!tpu.dma_semaphore, #tpu.memory_space<semaphore_mem>>
    tpu.enqueue_dma source(%2 : memref<16x16xf32, #tpu.memory_space<any>>) target(%3 : memref<16x16xf32, #tpu.memory_space<any>>) target_semaphore(%5 : memref<!tpu.dma_semaphore, #tpu.memory_space<semaphore_mem>>)
    %c16_i32 = arith.constant 16 : i32
    %6 = arith.addi %0, %c16_i32 : i32
    %c1_i32 = arith.constant 1 : i32
    %c0_i32_3 = arith.constant 0 : i32
    %7 = tpu.memref_slice %arg1[%6, %c0_i32_3] : memref<128x16xf32, #tpu.memory_space<any>> -> memref<16x16xf32, #tpu.memory_space<any>>
    %c0_i32_4 = arith.constant 0 : i32
    %8 = tpu.memref_slice %arg2[%6, %c0_i32_4] : memref<128x16xf32, #tpu.memory_space<any>> -> memref<16x16xf32, #tpu.memory_space<any>>
    %9 = tpu.memref_slice %arg3[%arg0, %c1_i32] : memref<2x5x!tpu.dma_semaphore, #tpu.memory_space<semaphore_mem>> -> memref<1x1x!tpu.dma_semaphore, #tpu.memory_space<semaphore_mem>>
    %10 = tpu.memref_squeeze %9 : memref<1x1x!tpu.dma_semaphore, #tpu.memory_space<semaphore_mem>> -> memref<!tpu.dma_semaphore, #tpu.memory_space<semaphore_mem>>
    tpu.enqueue_dma source(%7 : memref<16x16xf32, #tpu.memory_space<any>>) target(%8 : memref<16x16xf32, #tpu.memory_space<any>>) target_semaphore(%10 : memref<!tpu.dma_semaphore, #tpu.memory_space<semaphore_mem>>)
    %c32_i32 = arith.constant 32 : i32
    %11 = arith.addi %0, %c32_i32 : i32
    %c2_i32 = arith.constant 2 : i32
    %c0_i32_5 = arith.constant 0 : i32
    %12 = tpu.memref_slice %arg1[%11, %c0_i32_5] : memref<128x16xf32, #tpu.memory_space<any>> -> memref<16x16xf32, #tpu.memory_space<any>>
    %c0_i32_6 = arith.constant 0 : i32
    %13 = tpu.memref_slice %arg2[%11, %c0_i32_6] : memref<128x16xf32, #tpu.memory_space<any>> -> memref<16x16xf32, #tpu.memory_space<any>>
    %14 = tpu.memref_slice %arg3[%arg0, %c2_i32] : memref<2x5x!tpu.dma_semaphore, #tpu.memory_space<semaphore_mem>> -> memref<1x1x!tpu.dma_semaphore, #tpu.memory_space<semaphore_mem>>
    %15 = tpu.memref_squeeze %14 : memref<1x1x!tpu.dma_semaphore, #tpu.memory_space<semaphore_mem>> -> memref<!tpu.dma_semaphore, #tpu.memory_space<semaphore_mem>>
    tpu.enqueue_dma source(%12 : memref<16x16xf32, #tpu.memory_space<any>>) target(%13 : memref<16x16xf32, #tpu.memory_space<any>>) target_semaphore(%15 : memref<!tpu.dma_semaphore, #tpu.memory_space<semaphore_mem>>)
    %c48_i32 = arith.constant 48 : i32
    %16 = arith.addi %0, %c48_i32 : i32
    %c3_i32 = arith.constant 3 : i32
    %c0_i32_7 = arith.constant 0 : i32
    %17 = tpu.memref_slice %arg1[%16, %c0_i32_7] : memref<128x16xf32, #tpu.memory_space<any>> -> memref<16x16xf32, #tpu.memory_space<any>>
    %c0_i32_8 = arith.constant 0 : i32
    %18 = tpu.memref_slice %arg2[%16, %c0_i32_8] : memref<128x16xf32, #tpu.memory_space<any>> -> memref<16x16xf32, #tpu.memory_space<any>>
    %19 = tpu.memref_slice %arg3[%arg0, %c3_i32] : memref<2x5x!tpu.dma_semaphore, #tpu.memory_space<semaphore_mem>> -> memref<1x1x!tpu.dma_semaphore, #tpu.memory_space<semaphore_mem>>
    %20 = tpu.memref_squeeze %19 : memref<1x1x!tpu.dma_semaphore, #tpu.memory_space<semaphore_mem>> -> memref<!tpu.dma_semaphore, #tpu.memory_space<semaphore_mem>>
    tpu.enqueue_dma source(%17 : memref<16x16xf32, #tpu.memory_space<any>>) target(%18 : memref<16x16xf32, #tpu.memory_space<any>>) target_semaphore(%20 : memref<!tpu.dma_semaphore, #tpu.memory_space<semaphore_mem>>)
    %c0_i32_9 = arith.constant 0 : i32
    %c0_i32_10 = arith.constant 0 : i32
    %21 = tpu.memref_slice %arg1[%1, %c0_i32_10] : memref<128x16xf32, #tpu.memory_space<any>> -> memref<16x16xf32, #tpu.memory_space<any>>
    %c0_i32_11 = arith.constant 0 : i32
    %22 = tpu.memref_slice %arg2[%1, %c0_i32_11] : memref<128x16xf32, #tpu.memory_space<any>> -> memref<16x16xf32, #tpu.memory_space<any>>
    %23 = tpu.memref_slice %arg3[%arg0, %c0_i32_9] : memref<2x5x!tpu.dma_semaphore, #tpu.memory_space<semaphore_mem>> -> memref<1x1x!tpu.dma_semaphore, #tpu.memory_space<semaphore_mem>>
    %24 = tpu.memref_squeeze %23 : memref<1x1x!tpu.dma_semaphore, #tpu.memory_space<semaphore_mem>> -> memref<!tpu.dma_semaphore, #tpu.memory_space<semaphore_mem>>
    tpu.wait_dma2 semaphore(%24 : memref<!tpu.dma_semaphore, #tpu.memory_space<semaphore_mem>>) src(%21 : memref<16x16xf32, #tpu.memory_space<any>>) dst(%22 : memref<16x16xf32, #tpu.memory_space<any>>)
    %c1_i32_12 = arith.constant 1 : i32
    %c0_i32_13 = arith.constant 0 : i32
    %25 = tpu.memref_slice %arg1[%6, %c0_i32_13] : memref<128x16xf32, #tpu.memory_space<any>> -> memref<16x16xf32, #tpu.memory_space<any>>
    %c0_i32_14 = arith.constant 0 : i32
    %26 = tpu.memref_slice %arg2[%6, %c0_i32_14] : memref<128x16xf32, #tpu.memory_space<any>> -> memref<16x16xf32, #tpu.memory_space<any>>
    %27 = tpu.memref_slice %arg3[%arg0, %c1_i32_12] : memref<2x5x!tpu.dma_semaphore, #tpu.memory_space<semaphore_mem>> -> memref<1x1x!tpu.dma_semaphore, #tpu.memory_space<semaphore_mem>>
    %28 = tpu.memref_squeeze %27 : memref<1x1x!tpu.dma_semaphore, #tpu.memory_space<semaphore_mem>> -> memref<!tpu.dma_semaphore, #tpu.memory_space<semaphore_mem>>
    tpu.wait_dma2 semaphore(%28 : memref<!tpu.dma_semaphore, #tpu.memory_space<semaphore_mem>>) src(%25 : memref<16x16xf32, #tpu.memory_space<any>>) dst(%26 : memref<16x16xf32, #tpu.memory_space<any>>)
    %c2_i32_15 = arith.constant 2 : i32
    %c0_i32_16 = arith.constant 0 : i32
    %29 = tpu.memref_slice %arg1[%11, %c0_i32_16] : memref<128x16xf32, #tpu.memory_space<any>> -> memref<16x16xf32, #tpu.memory_space<any>>
    %c0_i32_17 = arith.constant 0 : i32
    %30 = tpu.memref_slice %arg2[%11, %c0_i32_17] : memref<128x16xf32, #tpu.memory_space<any>> -> memref<16x16xf32, #tpu.memory_space<any>>
    %31 = tpu.memref_slice %arg3[%arg0, %c2_i32_15] : memref<2x5x!tpu.dma_semaphore, #tpu.memory_space<semaphore_mem>> -> memref<1x1x!tpu.dma_semaphore, #tpu.memory_space<semaphore_mem>>
    %32 = tpu.memref_squeeze %31 : memref<1x1x!tpu.dma_semaphore, #tpu.memory_space<semaphore_mem>> -> memref<!tpu.dma_semaphore, #tpu.memory_space<semaphore_mem>>
    tpu.wait_dma2 semaphore(%32 : memref<!tpu.dma_semaphore, #tpu.memory_space<semaphore_mem>>) src(%29 : memref<16x16xf32, #tpu.memory_space<any>>) dst(%30 : memref<16x16xf32, #tpu.memory_space<any>>)
    %c3_i32_18 = arith.constant 3 : i32
    %c0_i32_19 = arith.constant 0 : i32
    %33 = tpu.memref_slice %arg1[%16, %c0_i32_19] : memref<128x16xf32, #tpu.memory_space<any>> -> memref<16x16xf32, #tpu.memory_space<any>>
    %c0_i32_20 = arith.constant 0 : i32
    %34 = tpu.memref_slice %arg2[%16, %c0_i32_20] : memref<128x16xf32, #tpu.memory_space<any>> -> memref<16x16xf32, #tpu.memory_space<any>>
    %35 = tpu.memref_slice %arg3[%arg0, %c3_i32_18] : memref<2x5x!tpu.dma_semaphore, #tpu.memory_space<semaphore_mem>> -> memref<1x1x!tpu.dma_semaphore, #tpu.memory_space<semaphore_mem>>
    %36 = tpu.memref_squeeze %35 : memref<1x1x!tpu.dma_semaphore, #tpu.memory_space<semaphore_mem>> -> memref<!tpu.dma_semaphore, #tpu.memory_space<semaphore_mem>>
    tpu.wait_dma2 semaphore(%36 : memref<!tpu.dma_semaphore, #tpu.memory_space<semaphore_mem>>) src(%33 : memref<16x16xf32, #tpu.memory_space<any>>) dst(%34 : memref<16x16xf32, #tpu.memory_space<any>>)
    return
  }
}

</mosaic_0001>

<llo_original>
// kernel: tpu_custom_call.1
$region0: #{tpu_custom_call.1}
  #allocation0 [shape = 'u32[]', space=smem, size = 0x4, offset = 0x4, fixed_abs, tag = 'smem constant byte address 0x4 - core index']
  #allocation1 [shape = 'u32[144,128]{1,0:T(1,128)}', space=vmem, size = 0x12000, scoped, tag = 'internal scratch']
  #allocation2 [shape = 's32[10]{0}', space=sflag, size = 0x28, scoped, tag = 'scratch operand']
  #allocation3 [shape = 's32[]', space=sflag, size = 0x4, offset = 0, fixed_abs, tag = 'sflag constant byte address 0x0 - dummy sync flag']
  #allocation4 [shape = 's32[]', space=sflag, size = 0x4, offset = 0, fixed_abs, tag = 'sflag constant byte address 0x0 - dummy sync flag']
  #allocation5 [shape = 's32[]', space=sflag, size = 0x4, offset = 0, fixed_abs, tag = 'sflag constant byte address 0x0 - dummy sync flag']
  #allocation6 [shape = 's32[]', space=sflag, size = 0x4, offset = 0, fixed_abs, tag = 'sflag constant byte address 0x0 - dummy sync flag']
  %s0 = inlined_call_operand.vmem [shape: f32[128,16], index: 0, kind: input, shape index: {}]
  %s1 = inlined_call_operand.vmem [shape: f32[128,16], index: 1, kind: output, shape index: {}]
  %s2 = sld [smem:[#allocation0]]
  $region145: #{tpu_custom_call.1} parent=0
    _
  %s4 = ssub.s32 1, %s2
  %s5 = scalar_select 0, %s4, %s2
  loop: start=0, step=1, limit=2
  $region2: #{tpu_custom_call.1} parent=0 // loop_pre_header
    _
  $region3: #{tpu_custom_call.1} parent=0 // loop_header
    %s7 = sphi 0, %s11
    %p8 = scmp.ge.s32.totalorder %s7, 2
  $region4: #{tpu_custom_call.1} parent=0 // loop_header_branch
    %10 = sbr.rel (%p8) target = $region8
  $region5: #{tpu_custom_call.1} parent=0 // loop_body
    %s12 = sadd.s32 %s7, 1
    %s13 = smul.u32 %s7, 64
    %s14 = scalar_lea.vmem %s0, %s13
    %s15 = scalar_lea.vmem %s1, %s13
    %s16 = smul.u32 %s7, 5
    %s17 = scalar_lea.sflag [#allocation2], %s16
    %p19 = scmp.lt.u32.totalorder 16, 8
    %p20 = pneg %p19
    // Predicated region
    $region9: #{tpu_custom_call.1} parent=5 // pred_check
      _
    $region10: #{tpu_custom_call.1} parent=5 // pred_check_branch
      %22 = sbr.rel (%p19) target = $region12
    $region11: #{tpu_custom_call.1} parent=5 // pred_region
      %s37 = sand.u32 16, 7
      %p38 = scmp.eq.s32.totalorder %s37, 0
      // Predicated region
      $region24: #{tpu_custom_call.1} parent=11 // pred_check
        %p39 = pneg %p38
      $region25: #{tpu_custom_call.1} parent=11 // pred_check_branch
        %41 = sbr.rel (%p39) target = $region27
      $region26: #{tpu_custom_call.1} parent=11 // pred_region
        loop: start=0, step=1, limit=1
        $region28: #{tpu_custom_call.1} parent=26 // loop_pre_header
          _
        $region29: #{tpu_custom_call.1} parent=26 // loop_header
          %s43 = sphi 0, %s47
          %p44 = scmp.ge.s32.totalorder %s43, 1
          %s48 = sphi %s14, %s14
          %s49 = sphi %s15, %s15
        $region30: #{tpu_custom_call.1} parent=26 // loop_header_branch
          %46 = sbr.rel (%p44) target = $region34
        $region31: #{tpu_custom_call.1} parent=26 // loop_body
          %v50 = vld [vmem:[%s48] sm:$0xff]
          %51 = vst [vmem:[%s49] sm:$0xff] %v50
          %v52 = vld [vmem:[%s48 + $0x8] sm:$0xff]
          %53 = vst [vmem:[%s49 + $0x8] sm:$0xff] %v52
        $region32: #{tpu_custom_call.1} parent=26 // loop_footer
          %s47 = sadd.s32 1, %s43
        $region33: #{tpu_custom_call.1} parent=26 // loop_footer_branch
          %42 = sbr.rel target = $region29
        $region34: #{tpu_custom_call.1} parent=26 // loop_exit
          _
      $region27: #{tpu_custom_call.1} parent=11 // pred_fallthru
        _
      %p54 = pneg %p38
      // Predicated region
      $region35: #{tpu_custom_call.1} parent=11 // pred_check
        _
      $region36: #{tpu_custom_call.1} parent=11 // pred_check_branch
        %56 = sbr.rel (%p38) target = $region38
      $region37: #{tpu_custom_call.1} parent=11 // pred_region
        %s57 = sand.u32 16, 7
      $region38: #{tpu_custom_call.1} parent=11 // pred_fallthru
        _
    $region12: #{tpu_custom_call.1} parent=5 // pred_fallthru
      _
    // Predicated region
    $region13: #{tpu_custom_call.1} parent=5 // pred_check
      %p23 = pneg %p19
    $region14: #{tpu_custom_call.1} parent=5 // pred_check_branch
      %25 = sbr.rel (%p23) target = $region16
    $region15: #{tpu_custom_call.1} parent=5 // pred_region
      %s26 = sshllo.u32 0, 16
      loop: start=0, step=1, limit=1
      $region17: #{tpu_custom_call.1} parent=15 // loop_pre_header
        _
      $region18: #{tpu_custom_call.1} parent=15 // loop_header
        %s28 = sphi 0, %s32
        %p29 = scmp.ge.s32.totalorder %s28, 1
        %s33 = sphi %s14, %s14
        %s34 = sphi %s15, %s15
      $region19: #{tpu_custom_call.1} parent=15 // loop_header_branch
        %31 = sbr.rel (%p29) target = $region23
      $region20: #{tpu_custom_call.1} parent=15 // loop_body
        %v35 = vld [vmem:[%s33] sm:%s26]
        %36 = vst [vmem:[%s34] sm:%s26] %v35
      $region21: #{tpu_custom_call.1} parent=15 // loop_footer
        %s32 = sadd.s32 1, %s28
      $region22: #{tpu_custom_call.1} parent=15 // loop_footer_branch
        %27 = sbr.rel target = $region18
      $region23: #{tpu_custom_call.1} parent=15 // loop_exit
        _
    $region16: #{tpu_custom_call.1} parent=5 // pred_fallthru
      _
    // Predicated region
    $region39: #{tpu_custom_call.1} parent=5 // pred_check
      _
    $region40: #{tpu_custom_call.1} parent=5 // pred_check_branch
      %60 = sbr.rel (0) target = $region42
    $region41: #{tpu_custom_call.1} parent=5 // pred_region
      %61 = vsyncadd %s17, 256
    $region42: #{tpu_custom_call.1} parent=5 // pred_fallthru
      _
    %s62 = sadd.s32 %s13, 16
    %s63 = scalar_lea.vmem %s0, %s62
    %s64 = scalar_lea.vmem %s1, %s62
    %s65 = sadd.s32 1, %s16
    %s66 = scalar_lea.sflag [#allocation2], %s65
    %p68 = scmp.lt.u32.totalorder 16, 8
    %p69 = pneg %p68
    // Predicated region
    $region43: #{tpu_custom_call.1} parent=5 // pred_check
      _
    $region44: #{tpu_custom_call.1} parent=5 // pred_check_branch
      %71 = sbr.rel (%p68) target = $region46
    $region45: #{tpu_custom_call.1} parent=5 // pred_region
      %s86 = sand.u32 16, 7
      %p87 = scmp.eq.s32.totalorder %s86, 0
      // Predicated region
      $region58: #{tpu_custom_call.1} parent=45 // pred_check
        %p88 = pneg %p87
      $region59: #{tpu_custom_call.1} parent=45 // pred_check_branch
        %90 = sbr.rel (%p88) target = $region61
      $region60: #{tpu_custom_call.1} parent=45 // pred_region
        loop: start=0, step=1, limit=1
        $region62: #{tpu_custom_call.1} parent=60 // loop_pre_header
          _
        $region63: #{tpu_custom_call.1} parent=60 // loop_header
          %s92 = sphi 0, %s96
          %p93 = scmp.ge.s32.totalorder %s92, 1
          %s97 = sphi %s63, %s63
          %s98 = sphi %s64, %s64
        $region64: #{tpu_custom_call.1} parent=60 // loop_header_branch
          %95 = sbr.rel (%p93) target = $region68
        $region65: #{tpu_custom_call.1} parent=60 // loop_body
          %v99 = vld [vmem:[%s97] sm:$0xff]
          %100 = vst [vmem:[%s98] sm:$0xff] %v99
          %v101 = vld [vmem:[%s97 + $0x8] sm:$0xff]
          %102 = vst [vmem:[%s98 + $0x8] sm:$0xff] %v101
        $region66: #{tpu_custom_call.1} parent=60 // loop_footer
          %s96 = sadd.s32 1, %s92
        $region67: #{tpu_custom_call.1} parent=60 // loop_footer_branch
          %91 = sbr.rel target = $region63
        $region68: #{tpu_custom_call.1} parent=60 // loop_exit
          _
      $region61: #{tpu_custom_call.1} parent=45 // pred_fallthru
        _
      %p103 = pneg %p87
      // Predicated region
      $region69: #{tpu_custom_call.1} parent=45 // pred_check
        _
      $region70: #{tpu_custom_call.1} parent=45 // pred_check_branch
        %105 = sbr.rel (%p87) target = $region72
      $region71: #{tpu_custom_call.1} parent=45 // pred_region
        %s106 = sand.u32 16, 7
      $region72: #{tpu_custom_call.1} parent=45 // pred_fallthru
        _
    $region46: #{tpu_custom_call.1} parent=5 // pred_fallthru
      _
    // Predicated region
    $region47: #{tpu_custom_call.1} parent=5 // pred_check
      %p72 = pneg %p68
    $region48: #{tpu_custom_call.1} parent=5 // pred_check_branch
      %74 = sbr.rel (%p72) target = $region50
    $region49: #{tpu_custom_call.1} parent=5 // pred_region
      %s75 = sshllo.u32 0, 16
      loop: start=0, step=1, limit=1
      $region51: #{tpu_custom_call.1} parent=49 // loop_pre_header
        _
      $region52: #{tpu_custom_call.1} parent=49 // loop_header
        %s77 = sphi 0, %s81
        %p78 = scmp.ge.s32.totalorder %s77, 1
        %s82 = sphi %s63, %s63
        %s83 = sphi %s64, %s64
      $region53: #{tpu_custom_call.1} parent=49 // loop_header_branch
        %80 = sbr.rel (%p78) target = $region57
      $region54: #{tpu_custom_call.1} parent=49 // loop_body
        %v84 = vld [vmem:[%s82] sm:%s75]
        %85 = vst [vmem:[%s83] sm:%s75] %v84
      $region55: #{tpu_custom_call.1} parent=49 // loop_footer
        %s81 = sadd.s32 1, %s77
      $region56: #{tpu_custom_call.1} parent=49 // loop_footer_branch
        %76 = sbr.rel target = $region52
      $region57: #{tpu_custom_call.1} parent=49 // loop_exit
        _
    $region50: #{tpu_custom_call.1} parent=5 // pred_fallthru
      _
    // Predicated region
    $region73: #{tpu_custom_call.1} parent=5 // pred_check
      _
    $region74: #{tpu_custom_call.1} parent=5 // pred_check_branch
      %109 = sbr.rel (0) target = $region76
    $region75: #{tpu_custom_call.1} parent=5 // pred_region
      %110 = vsyncadd %s66, 256
    $region76: #{tpu_custom_call.1} parent=5 // pred_fallthru
      _
    %s111 = sadd.s32 %s13, 32
    %s112 = scalar_lea.vmem %s0, %s111
    %s113 = scalar_lea.vmem %s1, %s111
    %s114 = sadd.s32 2, %s16
    %s115 = scalar_lea.sflag [#allocation2], %s114
    %p117 = scmp.lt.u32.totalorder 16, 8
    %p118 = pneg %p117
    // Predicated region
    $region77: #{tpu_custom_call.1} parent=5 // pred_check
      _
    $region78: #{tpu_custom_call.1} parent=5 // pred_check_branch
      %120 = sbr.rel (%p117) target = $region80
    $region79: #{tpu_custom_call.1} parent=5 // pred_region
      %s135 = sand.u32 16, 7
      %p136 = scmp.eq.s32.totalorder %s135, 0
      // Predicated region
      $region92: #{tpu_custom_call.1} parent=79 // pred_check
        %p137 = pneg %p136
      $region93: #{tpu_custom_call.1} parent=79 // pred_check_branch
        %139 = sbr.rel (%p137) target = $region95
      $region94: #{tpu_custom_call.1} parent=79 // pred_region
        loop: start=0, step=1, limit=1
        $region96: #{tpu_custom_call.1} parent=94 // loop_pre_header
          _
        $region97: #{tpu_custom_call.1} parent=94 // loop_header
          %s141 = sphi 0, %s145
          %p142 = scmp.ge.s32.totalorder %s141, 1
          %s146 = sphi %s112, %s112
          %s147 = sphi %s113, %s113
        $region98: #{tpu_custom_call.1} parent=94 // loop_header_branch
          %144 = sbr.rel (%p142) target = $region102
        $region99: #{tpu_custom_call.1} parent=94 // loop_body
          %v148 = vld [vmem:[%s146] sm:$0xff]
          %149 = vst [vmem:[%s147] sm:$0xff] %v148
          %v150 = vld [vmem:[%s146 + $0x8] sm:$0xff]
          %151 = vst [vmem:[%s147 + $0x8] sm:$0xff] %v150
        $region100: #{tpu_custom_call.1} parent=94 // loop_footer
          %s145 = sadd.s32 1, %s141
        $region101: #{tpu_custom_call.1} parent=94 // loop_footer_branch
          %140 = sbr.rel target = $region97
        $region102: #{tpu_custom_call.1} parent=94 // loop_exit
          _
      $region95: #{tpu_custom_call.1} parent=79 // pred_fallthru
        _
      %p152 = pneg %p136
      // Predicated region
      $region103: #{tpu_custom_call.1} parent=79 // pred_check
        _
      $region104: #{tpu_custom_call.1} parent=79 // pred_check_branch
        %154 = sbr.rel (%p136) target = $region106
      $region105: #{tpu_custom_call.1} parent=79 // pred_region
        %s155 = sand.u32 16, 7
      $region106: #{tpu_custom_call.1} parent=79 // pred_fallthru
        _
    $region80: #{tpu_custom_call.1} parent=5 // pred_fallthru
      _
    // Predicated region
    $region81: #{tpu_custom_call.1} parent=5 // pred_check
      %p121 = pneg %p117
    $region82: #{tpu_custom_call.1} parent=5 // pred_check_branch
      %123 = sbr.rel (%p121) target = $region84
    $region83: #{tpu_custom_call.1} parent=5 // pred_region
      %s124 = sshllo.u32 0, 16
      loop: start=0, step=1, limit=1
      $region85: #{tpu_custom_call.1} parent=83 // loop_pre_header
        _
      $region86: #{tpu_custom_call.1} parent=83 // loop_header
        %s126 = sphi 0, %s130
        %p127 = scmp.ge.s32.totalorder %s126, 1
        %s131 = sphi %s112, %s112
        %s132 = sphi %s113, %s113
      $region87: #{tpu_custom_call.1} parent=83 // loop_header_branch
        %129 = sbr.rel (%p127) target = $region91
      $region88: #{tpu_custom_call.1} parent=83 // loop_body
        %v133 = vld [vmem:[%s131] sm:%s124]
        %134 = vst [vmem:[%s132] sm:%s124] %v133
      $region89: #{tpu_custom_call.1} parent=83 // loop_footer
        %s130 = sadd.s32 1, %s126
      $region90: #{tpu_custom_call.1} parent=83 // loop_footer_branch
        %125 = sbr.rel target = $region86
      $region91: #{tpu_custom_call.1} parent=83 // loop_exit
        _
    $region84: #{tpu_custom_call.1} parent=5 // pred_fallthru
      _
    // Predicated region
    $region107: #{tpu_custom_call.1} parent=5 // pred_check
      _
    $region108: #{tpu_custom_call.1} parent=5 // pred_check_branch
      %158 = sbr.rel (0) target = $region110
    $region109: #{tpu_custom_call.1} parent=5 // pred_region
      %159 = vsyncadd %s115, 256
    $region110: #{tpu_custom_call.1} parent=5 // pred_fallthru
      _
    %s160 = sadd.s32 %s13, 48
    %s161 = scalar_lea.vmem %s0, %s160
    %s162 = scalar_lea.vmem %s1, %s160
    %s163 = sadd.s32 3, %s16
    %s164 = scalar_lea.sflag [#allocation2], %s163
    %p166 = scmp.lt.u32.totalorder 16, 8
    %p167 = pneg %p166
    // Predicated region
    $region111: #{tpu_custom_call.1} parent=5 // pred_check
      _
    $region112: #{tpu_custom_call.1} parent=5 // pred_check_branch
      %169 = sbr.rel (%p166) target = $region114
    $region113: #{tpu_custom_call.1} parent=5 // pred_region
      %s184 = sand.u32 16, 7
      %p185 = scmp.eq.s32.totalorder %s184, 0
      // Predicated region
      $region126: #{tpu_custom_call.1} parent=113 // pred_check
        %p186 = pneg %p185
      $region127: #{tpu_custom_call.1} parent=113 // pred_check_branch
        %188 = sbr.rel (%p186) target = $region129
      $region128: #{tpu_custom_call.1} parent=113 // pred_region
        loop: start=0, step=1, limit=1
        $region130: #{tpu_custom_call.1} parent=128 // loop_pre_header
          _
        $region131: #{tpu_custom_call.1} parent=128 // loop_header
          %s190 = sphi 0, %s194
          %p191 = scmp.ge.s32.totalorder %s190, 1
          %s195 = sphi %s161, %s161
          %s196 = sphi %s162, %s162
        $region132: #{tpu_custom_call.1} parent=128 // loop_header_branch
          %193 = sbr.rel (%p191) target = $region136
        $region133: #{tpu_custom_call.1} parent=128 // loop_body
          %v197 = vld [vmem:[%s195] sm:$0xff]
          %198 = vst [vmem:[%s196] sm:$0xff] %v197
          %v199 = vld [vmem:[%s195 + $0x8] sm:$0xff]
          %200 = vst [vmem:[%s196 + $0x8] sm:$0xff] %v199
        $region134: #{tpu_custom_call.1} parent=128 // loop_footer
          %s194 = sadd.s32 1, %s190
        $region135: #{tpu_custom_call.1} parent=128 // loop_footer_branch
          %189 = sbr.rel target = $region131
        $region136: #{tpu_custom_call.1} parent=128 // loop_exit
          _
      $region129: #{tpu_custom_call.1} parent=113 // pred_fallthru
        _
      %p201 = pneg %p185
      // Predicated region
      $region137: #{tpu_custom_call.1} parent=113 // pred_check
        _
      $region138: #{tpu_custom_call.1} parent=113 // pred_check_branch
        %203 = sbr.rel (%p185) target = $region140
      $region139: #{tpu_custom_call.1} parent=113 // pred_region
        %s204 = sand.u32 16, 7
      $region140: #{tpu_custom_call.1} parent=113 // pred_fallthru
        _
    $region114: #{tpu_custom_call.1} parent=5 // pred_fallthru
      _
    // Predicated region
    $region115: #{tpu_custom_call.1} parent=5 // pred_check
      %p170 = pneg %p166
    $region116: #{tpu_custom_call.1} parent=5 // pred_check_branch
      %172 = sbr.rel (%p170) target = $region118
    $region117: #{tpu_custom_call.1} parent=5 // pred_region
      %s173 = sshllo.u32 0, 16
      loop: start=0, step=1, limit=1
      $region119: #{tpu_custom_call.1} parent=117 // loop_pre_header
        _
      $region120: #{tpu_custom_call.1} parent=117 // loop_header
        %s175 = sphi 0, %s179
        %p176 = scmp.ge.s32.totalorder %s175, 1
        %s180 = sphi %s161, %s161
        %s181 = sphi %s162, %s162
      $region121: #{tpu_custom_call.1} parent=117 // loop_header_branch
        %178 = sbr.rel (%p176) target = $region125
      $region122: #{tpu_custom_call.1} parent=117 // loop_body
        %v182 = vld [vmem:[%s180] sm:%s173]
        %183 = vst [vmem:[%s181] sm:%s173] %v182
      $region123: #{tpu_custom_call.1} parent=117 // loop_footer
        %s179 = sadd.s32 1, %s175
      $region124: #{tpu_custom_call.1} parent=117 // loop_footer_branch
        %174 = sbr.rel target = $region120
      $region125: #{tpu_custom_call.1} parent=117 // loop_exit
        _
    $region118: #{tpu_custom_call.1} parent=5 // pred_fallthru
      _
    // Predicated region
    $region141: #{tpu_custom_call.1} parent=5 // pred_check
      _
    $region142: #{tpu_custom_call.1} parent=5 // pred_check_branch
      %207 = sbr.rel (0) target = $region144
    $region143: #{tpu_custom_call.1} parent=5 // pred_region
      %208 = vsyncadd %s164, 256
    $region144: #{tpu_custom_call.1} parent=5 // pred_fallthru
      _
    %s209 = smul.u32 16, 1
    %s210 = sshll.u32 %s209, 4
    %211 = dma.done %s17, %s210
    %s212 = sshll.u32 %s209, 4
    %213 = dma.done %s66, %s212
    %s214 = sshll.u32 %s209, 4
    %215 = dma.done %s115, %s214
    %s216 = sshll.u32 %s209, 4
    %217 = dma.done %s164, %s216
  $region6: #{tpu_custom_call.1} parent=0 // loop_footer
    %s11 = sadd.s32 1, %s7
  $region7: #{tpu_custom_call.1} parent=0 // loop_footer_branch
    %6 = sbr.rel target = $region3
  $region8: #{tpu_custom_call.1} parent=0 // loop_exit
    _
  %218 = vsyncmov [#allocation2]
  %s219 = vpop.sfrf %218
  %p220 = scmp.eq.s32.totalorder %s219, 0
  %p221 = pneg %p220
  %223 = shalt.err (%p221)
  %s224 = scalar_lea.sflag [#allocation2], 1
  %225 = vsyncmov %s224
  %s226 = vpop.sfrf %225
  %p227 = scmp.eq.s32.totalorder %s226, 0
  %p228 = pneg %p227
  %230 = shalt.err (%p228)
  %s231 = scalar_lea.sflag [#allocation2], 2
  %232 = vsyncmov %s231
  %s233 = vpop.sfrf %232
  %p234 = scmp.eq.s32.totalorder %s233, 0
  %p235 = pneg %p234
  %237 = shalt.err (%p235)
  %s238 = scalar_lea.sflag [#allocation2], 3
  %239 = vsyncmov %s238
  %s240 = vpop.sfrf %239
  %p241 = scmp.eq.s32.totalorder %s240, 0
  %p242 = pneg %p241
  %244 = shalt.err (%p242)
  %s245 = scalar_lea.sflag [#allocation2], 4
  %246 = vsyncmov %s245
  %s247 = vpop.sfrf %246
  %p248 = scmp.eq.s32.totalorder %s247, 0
  %p249 = pneg %p248
  %251 = shalt.err (%p249)
  %s252 = scalar_lea.sflag [#allocation2], 5
  %253 = vsyncmov %s252
  %s254 = vpop.sfrf %253
  %p255 = scmp.eq.s32.totalorder %s254, 0
  %p256 = pneg %p255
  %258 = shalt.err (%p256)
  %s259 = scalar_lea.sflag [#allocation2], 6
  %260 = vsyncmov %s259
  %s261 = vpop.sfrf %260
  %p262 = scmp.eq.s32.totalorder %s261, 0
  %p263 = pneg %p262
  %265 = shalt.err (%p263)
  %s266 = scalar_lea.sflag [#allocation2], 7
  %267 = vsyncmov %s266
  %s268 = vpop.sfrf %267
  %p269 = scmp.eq.s32.totalorder %s268, 0
  %p270 = pneg %p269
  %272 = shalt.err (%p270)
  %s273 = scalar_lea.sflag [#allocation2], 8
  %274 = vsyncmov %s273
  %s275 = vpop.sfrf %274
  %p276 = scmp.eq.s32.totalorder %s275, 0
  %p277 = pneg %p276
  %279 = shalt.err (%p277)
  %s280 = scalar_lea.sflag [#allocation2], 9
  %281 = vsyncmov %s280
  %s282 = vpop.sfrf %281
  %p283 = scmp.eq.s32.totalorder %s282, 0
  %p284 = pneg %p283
  %286 = shalt.err (%p284)

</llo_original>
